<compile_context>
chip_gen: v5e
topology: v5e:2x2
jax: 0.10.0
libtpu: 0.0.40
codegen_flags: <defaults>
</compile_context>

<pallas_src>
import functools

import jax
import jax.numpy as jnp
from jax.experimental import pallas as pl
from jax.experimental.pallas import tpu as pltpu

NUM_PARAM = 4  # self.num_param in the module


# ---------------------------------------------------------------------------
# Hardware-derived sizing helpers
# ---------------------------------------------------------------------------
def _vmem_capacity_bytes():
    """Physical VMEM per TensorCore; conservative fallback if the query fails."""
    try:
        return int(pltpu.get_tpu_info().vmem_capacity_bytes)
    except Exception:
        return 64 * 1024 * 1024  # v7x per-TC size; safe lower bound for v5e/v6e


def _pick_tile_b(state_size, buffer_budget_bytes):
    """Largest batch tile (multiple of 128, capped at 2048) whose f32
    double-buffer plus the resident weights fits the buffer budget."""
    weight_bytes = 4 * (state_size * 64 + 64 + 64 * 16 + 16 + 16 * 4 + 4)
    avail = buffer_budget_bytes - weight_bytes - (1 << 20)  # 1 MiB slack
    per_row = 2 * state_size * 4  # double-buffered f32 rows of x
    tb = max(128, min(2048, (avail // per_row) // 128 * 128))
    # TODO(synk): for very large state_size (>= ~32K) add a K grid axis over S
    # (accumulate the fc1 pre-activation in VMEM) instead of shrinking the tile.
    return int(tb)


def _num_tensorcores():
    """2 on v7x-class chips (2 TCs/chip), else 1.  Correct either way."""
    try:
        kind = jax.devices()[0].device_kind.lower()
        if "v7" in kind or "7x" in kind:
            return 2
    except Exception:
        pass
    return 1


# ---------------------------------------------------------------------------
# Kernel
# ---------------------------------------------------------------------------
def _pgn_kernel(x_ref, w1_ref, b1_ref, w2_ref, b2_ref, w3_ref, b3_ref,
                out_ref, acc_ref, *, batch, tile_b, tiles_per_core,
                needs_mask, fc1_bf16):
    # x_ref: (TB, S)   w1: (S, 64)  b1: (1, 64)   w2: (64, 16)  b2: (1, 16)
    # w3: (16, 4)      b3: (1, 4)
    # out_ref: (1, 1, 4) per-core partial row   acc_ref: (1, 4) f32 accumulator
    c = pl.program_id(0)          # core-split axis ("parallel")
    i = pl.program_id(1)          # batch-tile axis ("arbitrary", reduction)

    @pl.when(i == 0)
    def _init():
        acc_ref[...] = jnp.zeros_like(acc_ref)

    x = x_ref[...]
    w1 = w1_ref[...]
    if fc1_bf16:
        # bf16 MXU operands for the dominant fc1 matmul; f32 accumulation.
        x = x.astype(jnp.bfloat16)
        w1 = w1.astype(jnp.bfloat16)
    h1 = jnp.tanh(
        jnp.dot(x, w1, preferred_element_type=jnp.float32) + b1_ref[...]
    )
    h2 = jnp.tanh(
        jnp.dot(h1, w2_ref[...], preferred_element_type=jnp.float32) + b2_ref[...]
    )

    # fc3 + softmax + batch-sum, computed once (the PyTorch loop repeats the
    # identical computation NUM_PARAM times; rows are identical by construction).
    logits = (
        jnp.dot(h2, w3_ref[...], preferred_element_type=jnp.float32) + b3_ref[...]
    )  # (TB, 4)
    m = jnp.max(logits, axis=-1, keepdims=True)
    e = jnp.exp(logits - m)
    probs = e * pl.reciprocal(jnp.sum(e, axis=-1, keepdims=True), approx=False)

    if needs_mask:
        g = c * tiles_per_core + i           # global batch-tile index
        full = (g + 1) * tile_b <= batch     # whole tile lies inside the batch

        @pl.when(full)
        def _acc_full():
            acc_ref[...] += jnp.sum(probs, axis=0, keepdims=True)

        @pl.when(jnp.logical_not(full))
        def _acc_partial():
            # Mask padded / dead rows (stale VMEM data may be NaN/Inf after
            # tanh/softmax; jnp.where selects 0.0 for them, valid rows unaffected).
            row = g * tile_b + jax.lax.broadcasted_iota(jnp.int32, (tile_b, 1), 0)
            masked = jnp.where(row < batch, probs, 0.0)
            acc_ref[...] += jnp.sum(masked, axis=0, keepdims=True)
    else:
        acc_ref[...] += jnp.sum(probs, axis=0, keepdims=True)

    @pl.when(i == tiles_per_core - 1)
    def _finalize():
        out_ref[...] = acc_ref[...].reshape(out_ref.shape)


# ---------------------------------------------------------------------------
# Wrapper
# ---------------------------------------------------------------------------
def policy_gradient_forward(x, params, *, fc1_bf16=False, tile_b=None,
                            num_cores=None):
    """x: (B, *state_dims) float32. Returns (NUM_PARAM, 4) float32."""
    B = x.shape[0]
    flt = x.reshape(B, -1)                  # nn.Flatten()
    S = flt.shape[1]
    w1, b1, w2, b2, w3, b3 = params

    vmem_bytes = _vmem_capacity_bytes()
    buffer_budget = (vmem_bytes * 3) // 4               # ~48 MiB v7x, ~96 MiB v5e/v6e
    vmem_limit = max(32 << 20, min(vmem_bytes - (8 << 20), 112 << 20))

    if tile_b is None:
        tile_b = _pick_tile_b(S, buffer_budget)
    # TB = full batch (any size) or a multiple of 128 (>= 8) -> (8,128)-safe.
    TB = B if B <= tile_b else int(tile_b)
    n_tiles = -(-B // TB)

    if num_cores is None:
        num_cores = _num_tensorcores()
    num_cores = max(1, min(int(num_cores), n_tiles))
    tiles_per_core = -(-n_tiles // num_cores)
    needs_mask = (B % TB != 0) or (num_cores * tiles_per_core != n_tiles)

    kernel = functools.partial(
        _pgn_kernel, batch=B, tile_b=TB, tiles_per_core=tiles_per_core,
        needs_mask=needs_mask, fc1_bf16=fc1_bf16)

    def x_map(c, i):
        # Clamp so dead tiles (only when num_cores does not divide n_tiles)
        # read a valid block; their contribution is masked to zero in-kernel.
        return (jnp.minimum(c * tiles_per_core + i, n_tiles - 1), 0)

    def _resident(shape):
        # Constant index_map + single buffer: never re-fetched, not double-buffered.
        return pl.BlockSpec(shape, lambda c, i: (0, 0),
                            pipeline_mode=pl.Buffered(1))

    grid_spec = pltpu.PrefetchScalarGridSpec(
        num_scalar_prefetch=0,
        grid=(num_cores, tiles_per_core),
        in_specs=[
            pl.BlockSpec((TB, S), x_map),    # x tile (double-buffered stream)
            _resident((S, 64)),              # w1
            _resident((1, 64)),              # b1
            _resident((64, 16)),             # w2
            _resident((1, 16)),              # b2
            _resident((16, 4)),              # w3
            _resident((1, 4)),               # b3
        ],
        out_specs=pl.BlockSpec((1, 1, 4), lambda c, i: (c, 0, 0)),
        scratch_shapes=[pltpu.VMEM((1, 4), jnp.float32)],
    )

    partial_sums = pl.pallas_call(
        kernel,
        out_shape=jax.ShapeDtypeStruct((num_cores, 1, 4), jnp.float32),
        grid_spec=grid_spec,
        compiler_params=pltpu.CompilerParams(
            # axis 0: independent per-core partial rows -> "parallel"
            # axis 1: batch reduction into the shared accumulator -> "arbitrary"
            dimension_semantics=("parallel", "arbitrary"),
            vmem_limit_bytes=int(vmem_limit),
        ),
    )(flt, w1, b1, w2, b2, w3, b3)

    row = jnp.sum(partial_sums, axis=0)                  # (1, 4)
    # The PyTorch loop produces NUM_PARAM identical rows -> broadcast once.
    return jnp.broadcast_to(row, (NUM_PARAM, 4))


# ---------------------------------------------------------------------------
# Params / reference
# ---------------------------------------------------------------------------
def init_params(state_size, key):
    """Deterministic synthetic init mirroring the Linear layer shapes.

    PyTorch Linear(in, out) stores weight (out, in); we store the transpose
    (in, out) so the kernel multiplies on the right. Biases are (1, out).
    """
    ks = jax.random.split(key, 6)

    def lin(kw, kb, fan_in, fan_out):
        bound = 1.0 / jnp.sqrt(jnp.float32(fan_in))
        w = jax.random.uniform(kw, (fan_in, fan_out), jnp.float32, -bound, bound)
        b = jax.random.uniform(kb, (1, fan_out), jnp.float32, -bound, bound)
        return w, b

    w1, b1 = lin(ks[0], ks[1], state_size, 64)
    w2, b2 = lin(ks[2], ks[3], 64, 16)
    w3, b3 = lin(ks[4], ks[5], 16, 4)
    return (w1, b1, w2, b2, w3, b3)


def reference_forward(x, params):
    """Pure-JAX reference (highest-precision matmuls) for sanity checking."""
    w1, b1, w2, b2, w3, b3 = params
    hp = jax.lax.Precision.HIGHEST
    flt = x.reshape(x.shape[0], -1)
    h1 = jnp.tanh(jnp.dot(flt, w1, precision=hp) + b1)
    h2 = jnp.tanh(jnp.dot(h1, w2, precision=hp) + b2)
    logits = jnp.dot(h2, w3, precision=hp) + b3
    p = jax.nn.softmax(logits, axis=-1)
    row = jnp.sum(p, axis=0)
    return jnp.stack([row] * NUM_PARAM)


if __name__ == "__main__":
    key = jax.random.PRNGKey(0)
    kx, kp, kx2 = jax.random.split(key, 3)

    # state shape (4, 16, 16) -> state_size = 1024
    B, C, H, W = 2, 4, 16, 16
    S = C * H * W
    params = init_params(S, kp)

    # 1) Small-batch f32 path (auto tile / core selection).
    x = jax.random.normal(kx, (B, C, H, W), jnp.float32)
    out = jax.block_until_ready(policy_gradient_forward(x, params))
    ref = reference_forward(x, params)
    assert out.shape == (NUM_PARAM, 4), out.shape
    # 1e-3 tolerance covers MXU f32 multi-pass vs XLA precision-mode differences.
    assert jnp.allclose(out, ref, atol=1e-3, rtol=1e-3), (out, ref)

    # 2) Multi-tile + partial-tile + 2-core-split path (tiny shapes, forced tiling).
    B2 = 20
    x2 = jax.random.normal(kx2, (B2, C, H, W), jnp.float32)
    out2 = jax.block_until_ready(
        policy_gradient_forward(x2, params, tile_b=8, num_cores=2))
    ref2 = reference_forward(x2, params)
    assert out2.shape == (NUM_PARAM, 4), out2.shape
    assert jnp.allclose(out2, ref2, atol=1e-3, rtol=1e-3), (out2, ref2)

    # 3) bf16 fc1-operand path (looser tolerance, per review correctness note).
    out3 = jax.block_until_ready(policy_gradient_forward(x, params, fc1_bf16=True))
    assert jnp.allclose(out3, ref, atol=5e-2, rtol=5e-2), (out3, ref)

    print("KERNEL_OK")
</pallas_src>

<mosaic_0001>
module attributes {stable_mosaic.version = 11 : i64} {
  func.func @_pgn_kernel(%arg0: i32, %arg1: i32, %arg2: memref<2x1024xf32, #tpu.memory_space<vmem>>, %arg3: memref<1024x64xf32, #tpu.memory_space<vmem>>, %arg4: memref<1x64xf32, #tpu.memory_space<vmem>>, %arg5: memref<64x16xf32, #tpu.memory_space<vmem>>, %arg6: memref<1x16xf32, #tpu.memory_space<vmem>>, %arg7: memref<16x4xf32, #tpu.memory_space<vmem>>, %arg8: memref<1x4xf32, #tpu.memory_space<vmem>>, %arg9: memref<1x1x4xf32, #tpu.memory_space<vmem>>, %arg10: memref<1x4xf32, #tpu.memory_space<vmem>>) attributes {dimension_semantics = [#tpu.dimension_semantics<parallel>, #tpu.dimension_semantics<arbitrary>], iteration_bounds = array<i64: 1, 1>, scalar_prefetch = 0 : i64, scratch_operands = 1 : i64, tpu.core_type = #tpu.core_type<tc>, window_params = [{transform_indices = @transform_0, window_bounds = array<i64: 2, 1024>}, {pipeline_mode = #tpu.pipeline_mode<synchronous>, transform_indices = @transform_1, window_bounds = array<i64: 1024, 64>}, {pipeline_mode = #tpu.pipeline_mode<synchronous>, transform_indices = @transform_2, window_bounds = array<i64: 1, 64>}, {pipeline_mode = #tpu.pipeline_mode<synchronous>, transform_indices = @transform_3, window_bounds = array<i64: 64, 16>}, {pipeline_mode = #tpu.pipeline_mode<synchronous>, transform_indices = @transform_4, window_bounds = array<i64: 1, 16>}, {pipeline_mode = #tpu.pipeline_mode<synchronous>, transform_indices = @transform_5, window_bounds = array<i64: 16, 4>}, {pipeline_mode = #tpu.pipeline_mode<synchronous>, transform_indices = @transform_6, window_bounds = array<i64: 1, 4>}, {transform_indices = @transform_7, window_bounds = array<i64: 1, 1, 4>}]} {
    %c0_i32 = arith.constant 0 : i32
    %0 = arith.cmpi eq, %arg1, %c0_i32 : i32
    %1 = arith.extui %0 : i1 to i32
    %c0_i32_0 = arith.constant 0 : i32
    %2 = arith.cmpi ne, %1, %c0_i32_0 : i32
    scf.if %2 {
      %cst_25 = arith.constant 0.000000e+00 : f32
      %39 = vector.broadcast %cst_25 : f32 to vector<1x4xf32>
      %c0_26 = arith.constant 0 : index
      %c0_27 = arith.constant 0 : index
      %40 = vector.load %arg10[%c0_26, %c0_27] : memref<1x4xf32, #tpu.memory_space<vmem>>, vector<1x4xf32>
      tpu.vector_store %arg10[%c0_26, %c0_27], %39 {strides = array<i32>} : memref<1x4xf32, #tpu.memory_space<vmem>>, vector<1x4xf32>,
    } else {
    }
    %c0 = arith.constant 0 : index
    %c0_1 = arith.constant 0 : index
    %3 = vector.load %arg2[%c0, %c0_1] : memref<2x1024xf32, #tpu.memory_space<vmem>>, vector<2x1024xf32>
    %c0_2 = arith.constant 0 : index
    %c0_3 = arith.constant 0 : index
    %4 = vector.load %arg3[%c0_2, %c0_3] : memref<1024x64xf32, #tpu.memory_space<vmem>>, vector<1024x64xf32>
    %cst = arith.constant dense<0.000000e+00> : vector<2x64xf32>
    %5 = tpu.matmul %3, %4, %cst {dimension_numbers = #tpu.dot_dimension_numbers<[1], [0], [0], [1], [0, 0, 1, 1], [], []>} : vector<2x1024xf32>, vector<1024x64xf32>, vector<2x64xf32> -> vector<2x64xf32>
    %c0_4 = arith.constant 0 : index
    %c0_5 = arith.constant 0 : index
    %6 = vector.load %arg4[%c0_4, %c0_5] : memref<1x64xf32, #tpu.memory_space<vmem>>, vector<1x64xf32>
    %7 = vector.broadcast %6 : vector<1x64xf32> to vector<2x64xf32>
    %8 = arith.addf %5, %7 : vector<2x64xf32>
    %9 = math.tanh %8 : vector<2x64xf32>
    %c0_6 = arith.constant 0 : index
    %c0_7 = arith.constant 0 : index
    %10 = vector.load %arg5[%c0_6, %c0_7] : memref<64x16xf32, #tpu.memory_space<vmem>>, vector<64x16xf32>
    %cst_8 = arith.constant dense<0.000000e+00> : vector<2x16xf32>
    %11 = tpu.matmul %9, %10, %cst_8 {dimension_numbers = #tpu.dot_dimension_numbers<[1], [0], [0], [1], [0, 0, 1, 1], [], []>} : vector<2x64xf32>, vector<64x16xf32>, vector<2x16xf32> -> vector<2x16xf32>
    %c0_9 = arith.constant 0 : index
    %c0_10 = arith.constant 0 : index
    %12 = vector.load %arg6[%c0_9, %c0_10] : memref<1x16xf32, #tpu.memory_space<vmem>>, vector<1x16xf32>
    %13 = vector.broadcast %12 : vector<1x16xf32> to vector<2x16xf32>
    %14 = arith.addf %11, %13 : vector<2x16xf32>
    %15 = math.tanh %14 : vector<2x16xf32>
    %c0_11 = arith.constant 0 : index
    %c0_12 = arith.constant 0 : index
    %16 = vector.load %arg7[%c0_11, %c0_12] : memref<16x4xf32, #tpu.memory_space<vmem>>, vector<16x4xf32>
    %cst_13 = arith.constant dense<0.000000e+00> : vector<2x4xf32>
    %17 = tpu.matmul %15, %16, %cst_13 {dimension_numbers = #tpu.dot_dimension_numbers<[1], [0], [0], [1], [0, 0, 1, 1], [], []>} : vector<2x16xf32>, vector<16x4xf32>, vector<2x4xf32> -> vector<2x4xf32>
    %c0_14 = arith.constant 0 : index
    %c0_15 = arith.constant 0 : index
    %18 = vector.load %arg8[%c0_14, %c0_15] : memref<1x4xf32, #tpu.memory_space<vmem>>, vector<1x4xf32>
    %19 = vector.broadcast %18 : vector<1x4xf32> to vector<2x4xf32>
    %20 = arith.addf %17, %19 : vector<2x4xf32>
    %cst_16 = arith.constant dense<0xFF800000> : vector<2xf32>
    %21 = vector.multi_reduction <maximumf>, %20, %cst_16 [1] : vector<2x4xf32> to vector<2xf32>
    %22 = vector.shape_cast %21 : vector<2xf32> to vector<2x1xf32>
    %23 = vector.broadcast %22 : vector<2x1xf32> to vector<2x4xf32>
    %24 = arith.subf %20, %23 : vector<2x4xf32>
    %25 = math.exp %24 : vector<2x4xf32>
    %cst_17 = arith.constant dense<0.000000e+00> : vector<2xf32>
    %26 = vector.multi_reduction <add>, %25, %cst_17 [1] : vector<2x4xf32> to vector<2xf32>
    %27 = vector.shape_cast %26 : vector<2xf32> to vector<2x1xf32>
    %28 = tpu.reciprocal %27 : vector<2x1xf32> -> vector<2x1xf32>
    %29 = vector.broadcast %28 : vector<2x1xf32> to vector<2x4xf32>
    %30 = arith.mulf %25, %29 : vector<2x4xf32>
    %c0_18 = arith.constant 0 : index
    %c0_19 = arith.constant 0 : index
    %31 = vector.load %arg10[%c0_18, %c0_19] : memref<1x4xf32, #tpu.memory_space<vmem>>, vector<1x4xf32>
    %cst_20 = arith.constant dense<0.000000e+00> : vector<4xf32>
    %32 = vector.multi_reduction <add>, %30, %cst_20 [0] : vector<2x4xf32> to vector<4xf32>
    %33 = vector.shape_cast %32 : vector<4xf32> to vector<1x4xf32>
    %34 = arith.addf %31, %33 : vector<1x4xf32>
    %c0_21 = arith.constant 0 : index
    %c0_22 = arith.constant 0 : index
    %35 = vector.load %arg10[%c0_21, %c0_22] : memref<1x4xf32, #tpu.memory_space<vmem>>, vector<1x4xf32>
    tpu.vector_store %arg10[%c0_21, %c0_22], %34 {strides = array<i32>} : memref<1x4xf32, #tpu.memory_space<vmem>>, vector<1x4xf32>,
    %c0_i32_23 = arith.constant 0 : i32
    %36 = arith.cmpi eq, %arg1, %c0_i32_23 : i32
    %37 = arith.extui %36 : i1 to i32
    %c0_i32_24 = arith.constant 0 : i32
    %38 = arith.cmpi ne, %37, %c0_i32_24 : i32
    scf.if %38 {
      %c0_25 = arith.constant 0 : index
      %c0_26 = arith.constant 0 : index
      %39 = vector.load %arg10[%c0_25, %c0_26] : memref<1x4xf32, #tpu.memory_space<vmem>>, vector<1x4xf32>
      %40 = vector.shape_cast %39 : vector<1x4xf32> to vector<1x1x4xf32>
      %c0_27 = arith.constant 0 : index
      %c0_28 = arith.constant 0 : index
      %c0_29 = arith.constant 0 : index
      %41 = vector.load %arg9[%c0_27, %c0_28, %c0_29] : memref<1x1x4xf32, #tpu.memory_space<vmem>>, vector<1x1x4xf32>
      tpu.vector_store %arg9[%c0_27, %c0_28, %c0_29], %40 {strides = array<i32>} : memref<1x1x4xf32, #tpu.memory_space<vmem>>, vector<1x1x4xf32>,
    } else {
    }
    return
  }
  func.func @transform_0(%arg0: i32, %arg1: i32) -> (i32, i32) {
    %c1_i32 = arith.constant 1 : i32
    %0 = arith.muli %arg0, %c1_i32 : i32
    %1 = arith.addi %0, %arg1 : i32
    %c0_i32 = arith.constant 0 : i32
    %2 = arith.minsi %1, %c0_i32 : i32
    %c0_i32_0 = arith.constant 0 : i32
    %c0_i32_1 = arith.constant 0 : i32
    return %2, %c0_i32_0 : i32, i32
  }
  func.func @transform_1(%arg0: i32, %arg1: i32) -> (i32, i32) {
    %c0_i32 = arith.constant 0 : i32
    %c0_i32_0 = arith.constant 0 : i32
    %c0_i32_1 = arith.constant 0 : i32
    return %c0_i32, %c0_i32_0 : i32, i32
  }
  func.func @transform_2(%arg0: i32, %arg1: i32) -> (i32, i32) {
    %c0_i32 = arith.constant 0 : i32
    %c0_i32_0 = arith.constant 0 : i32
    %c0_i32_1 = arith.constant 0 : i32
    return %c0_i32, %c0_i32_0 : i32, i32
  }
  func.func @transform_3(%arg0: i32, %arg1: i32) -> (i32, i32) {
    %c0_i32 = arith.constant 0 : i32
    %c0_i32_0 = arith.constant 0 : i32
    %c0_i32_1 = arith.constant 0 : i32
    return %c0_i32, %c0_i32_0 : i32, i32
  }
  func.func @transform_4(%arg0: i32, %arg1: i32) -> (i32, i32) {
    %c0_i32 = arith.constant 0 : i32
    %c0_i32_0 = arith.constant 0 : i32
    %c0_i32_1 = arith.constant 0 : i32
    return %c0_i32, %c0_i32_0 : i32, i32
  }
  func.func @transform_5(%arg0: i32, %arg1: i32) -> (i32, i32) {
    %c0_i32 = arith.constant 0 : i32
    %c0_i32_0 = arith.constant 0 : i32
    %c0_i32_1 = arith.constant 0 : i32
    return %c0_i32, %c0_i32_0 : i32, i32
  }
  func.func @transform_6(%arg0: i32, %arg1: i32) -> (i32, i32) {
    %c0_i32 = arith.constant 0 : i32
    %c0_i32_0 = arith.constant 0 : i32
    %c0_i32_1 = arith.constant 0 : i32
    return %c0_i32, %c0_i32_0 : i32, i32
  }
  func.func @transform_7(%arg0: i32, %arg1: i32) -> (i32, i32, i32) {
    %c0_i32 = arith.constant 0 : i32
    %c0_i32_0 = arith.constant 0 : i32
    %c0_i32_1 = arith.constant 0 : i32
    return %arg0, %c0_i32, %c0_i32_0 : i32, i32, i32
  }
}

</mosaic_0001>

<llo_original>
// kernel: tpu_custom_call.1
$region0: #{tpu_custom_call.1}
  #allocation0 [shape = 'u32[]', space=smem, size = 0x4, offset = 0x4, fixed_abs, tag = 'smem constant byte address 0x4 - core index']
  #allocation1 [shape = 'u32[72,128]{1,0:T(1,128)}', space=vmem, size = 0x9000, scoped, tag = 'internal scratch']
  #allocation2 [shape = 'f32[1,4]{1,0:T(1,128)}', space=vmem, size = 0x200, scoped, tag = 'scratch operand']
  %s0 = inlined_call_operand.vmem [shape: f32[2,1024], index: 0, kind: input, shape index: {}]
  %s1 = inlined_call_operand.vmem [shape: f32[1024,64], index: 1, kind: input, shape index: {}]
  %s2 = inlined_call_operand.vmem [shape: f32[1,64], index: 2, kind: input, shape index: {}]
  %s3 = inlined_call_operand.vmem [shape: f32[64,16], index: 3, kind: input, shape index: {}]
  %s4 = inlined_call_operand.vmem [shape: f32[1,16], index: 4, kind: input, shape index: {}]
  %s5 = inlined_call_operand.vmem [shape: f32[16,4], index: 5, kind: input, shape index: {}]
  %s6 = inlined_call_operand.vmem [shape: f32[1,4], index: 6, kind: input, shape index: {}]
  %s7 = inlined_call_operand.hbm [shape: f32[1,1,4], index: 7, kind: output, shape index: {}]
  %s8 = sld [smem:[#allocation0]]
  $region46: #{tpu_custom_call.1} parent=0
    _
  %s10 = ssub.s32 1, %s8
  %s11 = scalar_select 0, %s10, %s8
  $region1: #{tpu_custom_call.1} parent=0
    #allocation3 [shape = 'u8[512]{0}', space=vmem, size = 0x400, scoped, tag = 'output window, operand 0, single buffered']
    #allocation4 [shape = 's32[1]{0}', space=sflag, size = 0x4, scoped, tag = 'scoped memory for tpu_custom_call.1']
    %12 = vsyncpa [#allocation4], 0
    // Predicated region
    $region2: #{tpu_custom_call.1} parent=1 // pred_check
      _
    $region3: #{tpu_custom_call.1} parent=1 // pred_check_branch
      %14 = sbr.rel (0) target = $region5
    $region4: #{tpu_custom_call.1} parent=1 // pred_region
      %s15 = sadd.s32 0, 0
      %p16 = scmp.lt.s32.totalorder %s15, 0
      %s17 = scalar_select %p16, %s15, 0
      %p18 = scmp.lt.s32.totalorder %s17, 0
      %s19 = scalar_select %p18, %s17, 0
      %s20 = smul.addr %s19, 8
      %s21 = smul.addr %s20, 2
      %s22 = scalar_lea.vmem %s0, %s21
      %s23 = sadd.s32 0, 0
      %p24 = scmp.lt.s32.totalorder %s23, 0
      %s25 = scalar_select %p24, %s23, 0
    $region5: #{tpu_custom_call.1} parent=1 // pred_fallthru
      _
    // Predicated region
    $region6: #{tpu_custom_call.1} parent=1 // pred_check
      _
    $region7: #{tpu_custom_call.1} parent=1 // pred_check_branch
      %27 = sbr.rel (0) target = $region9
    $region8: #{tpu_custom_call.1} parent=1 // pred_region
      _
    $region9: #{tpu_custom_call.1} parent=1 // pred_fallthru
      _
    // Predicated region
    $region10: #{tpu_custom_call.1} parent=1 // pred_check
      _
    $region11: #{tpu_custom_call.1} parent=1 // pred_check_branch
      %29 = sbr.rel (0) target = $region13
    $region12: #{tpu_custom_call.1} parent=1 // pred_region
      _
    $region13: #{tpu_custom_call.1} parent=1 // pred_fallthru
      _
    // Predicated region
    $region14: #{tpu_custom_call.1} parent=1 // pred_check
      _
    $region15: #{tpu_custom_call.1} parent=1 // pred_check_branch
      %31 = sbr.rel (0) target = $region17
    $region16: #{tpu_custom_call.1} parent=1 // pred_region
      _
    $region17: #{tpu_custom_call.1} parent=1 // pred_fallthru
      _
    // Predicated region
    $region18: #{tpu_custom_call.1} parent=1 // pred_check
      _
    $region19: #{tpu_custom_call.1} parent=1 // pred_check_branch
      %33 = sbr.rel (0) target = $region21
    $region20: #{tpu_custom_call.1} parent=1 // pred_region
      _
    $region21: #{tpu_custom_call.1} parent=1 // pred_fallthru
      _
    // Predicated region
    $region22: #{tpu_custom_call.1} parent=1 // pred_check
      _
    $region23: #{tpu_custom_call.1} parent=1 // pred_check_branch
      %35 = sbr.rel (0) target = $region25
    $region24: #{tpu_custom_call.1} parent=1 // pred_region
      _
    $region25: #{tpu_custom_call.1} parent=1 // pred_fallthru
      _
    // Predicated region
    $region26: #{tpu_custom_call.1} parent=1 // pred_check
      _
    $region27: #{tpu_custom_call.1} parent=1 // pred_check_branch
      %37 = sbr.rel (0) target = $region29
    $region28: #{tpu_custom_call.1} parent=1 // pred_region
      _
    $region29: #{tpu_custom_call.1} parent=1 // pred_fallthru
      _
    %s38 = sadd.s32 0, 0
    %p39 = scmp.lt.s32.totalorder %s38, 0
    %s40 = scalar_select %p39, %s38, 0
    %p41 = scmp.lt.s32.totalorder %s40, 0
    %s42 = scalar_select %p41, %s40, 0
    %s43 = smul.addr %s42, 8
    %s44 = smul.addr %s43, 2
    %s45 = scalar_lea.vmem %s0, %s44
    %s46 = sadd.s32 0, 0
    %p47 = scmp.lt.s32.totalorder %s46, 0
    %s48 = scalar_select %p47, %s46, 0
    %p49 = scmp.lt.s32.totalorder %s48, 0
    %s50 = scalar_select %p49, %s48, 0
    %s51 = smul.addr %s50, 8
    %s52 = smul.addr %s51, 2
    %s53 = scalar_lea.vmem %s0, %s52
    %s54 = sadd.s32 0, 0
    %p55 = scmp.lt.s32.totalorder %s54, 0
    %s56 = scalar_select %p55, %s54, 0
    %p57 = scmp.eq.s32.totalorder 0, 0
    // Predicated region
    $region30: #{tpu_custom_call.1} parent=1 // pred_check
      %p58 = pneg %p57
    $region31: #{tpu_custom_call.1} parent=1 // pred_check_branch
      %60 = sbr.rel (%p58) target = $region33
    $region32: #{tpu_custom_call.1} parent=1 // pred_region
      %vm61 = vcmask 24576
      %62 = vst.msk [vmem:[#allocation2] sm:$0x1] %vm61, 0.0
    $region33: #{tpu_custom_call.1} parent=1 // pred_fallthru
      _
    %v63 = vld [vmem:[%s53] sm:$0xff]
    %v64 = vld [vmem:[%s53 + $0x8] sm:$0xff]
    %v65 = vld [vmem:[%s1] sm:$0xff]
    %v66 = vld [vmem:[%s1 + $0x8] sm:$0xff]
    %v67 = vld [vmem:[%s1 + $0x10] sm:$0xff]
    %v68 = vld [vmem:[%s1 + $0x18] sm:$0xff]
    %v69 = vld [vmem:[%s1 + $0x20] sm:$0xff]
    %v70 = vld [vmem:[%s1 + $0x28] sm:$0xff]
    %v71 = vld [vmem:[%s1 + $0x30] sm:$0xff]
    %v72 = vld [vmem:[%s1 + $0x38] sm:$0xff]
    %v73 = vld [vmem:[%s1 + $0x40] sm:$0xff]
    %v74 = vld [vmem:[%s1 + $0x48] sm:$0xff]
    %v75 = vld [vmem:[%s1 + $0x50] sm:$0xff]
    %v76 = vld [vmem:[%s1 + $0x58] sm:$0xff]
    %v77 = vld [vmem:[%s1 + $0x60] sm:$0xff]
    %v78 = vld [vmem:[%s1 + $0x68] sm:$0xff]
    %v79 = vld [vmem:[%s1 + $0x70] sm:$0xff]
    %v80 = vld [vmem:[%s1 + $0x78] sm:$0xff]
    %v81 = vld [vmem:[%s1 + $0x80] sm:$0xff]
    %v82 = vld [vmem:[%s1 + $0x88] sm:$0xff]
    %v83 = vld [vmem:[%s1 + $0x90] sm:$0xff]
    %v84 = vld [vmem:[%s1 + $0x98] sm:$0xff]
    %v85 = vld [vmem:[%s1 + $0xa0] sm:$0xff]
    %v86 = vld [vmem:[%s1 + $0xa8] sm:$0xff]
    %v87 = vld [vmem:[%s1 + $0xb0] sm:$0xff]
    %v88 = vld [vmem:[%s1 + $0xb8] sm:$0xff]
    %v89 = vld [vmem:[%s1 + $0xc0] sm:$0xff]
    %v90 = vld [vmem:[%s1 + $0xc8] sm:$0xff]
    %v91 = vld [vmem:[%s1 + $0xd0] sm:$0xff]
    %v92 = vld [vmem:[%s1 + $0xd8] sm:$0xff]
    %v93 = vld [vmem:[%s1 + $0xe0] sm:$0xff]
    %v94 = vld [vmem:[%s1 + $0xe8] sm:$0xff]
    %v95 = vld [vmem:[%s1 + $0xf0] sm:$0xff]
    %v96 = vld [vmem:[%s1 + $0xf8] sm:$0xff]
    %v97 = vld [vmem:[%s1 + $0x100] sm:$0xff]
    %v98 = vld [vmem:[%s1 + $0x108] sm:$0xff]
    %v99 = vld [vmem:[%s1 + $0x110] sm:$0xff]
    %v100 = vld [vmem:[%s1 + $0x118] sm:$0xff]
    %v101 = vld [vmem:[%s1 + $0x120] sm:$0xff]
    %v102 = vld [vmem:[%s1 + $0x128] sm:$0xff]
    %v103 = vld [vmem:[%s1 + $0x130] sm:$0xff]
    %v104 = vld [vmem:[%s1 + $0x138] sm:$0xff]
    %v105 = vld [vmem:[%s1 + $0x140] sm:$0xff]
    %v106 = vld [vmem:[%s1 + $0x148] sm:$0xff]
    %v107 = vld [vmem:[%s1 + $0x150] sm:$0xff]
    %v108 = vld [vmem:[%s1 + $0x158] sm:$0xff]
    %v109 = vld [vmem:[%s1 + $0x160] sm:$0xff]
    %v110 = vld [vmem:[%s1 + $0x168] sm:$0xff]
    %v111 = vld [vmem:[%s1 + $0x170] sm:$0xff]
    %v112 = vld [vmem:[%s1 + $0x178] sm:$0xff]
    %v113 = vld [vmem:[%s1 + $0x180] sm:$0xff]
    %v114 = vld [vmem:[%s1 + $0x188] sm:$0xff]
    %v115 = vld [vmem:[%s1 + $0x190] sm:$0xff]
    %v116 = vld [vmem:[%s1 + $0x198] sm:$0xff]
    %v117 = vld [vmem:[%s1 + $0x1a0] sm:$0xff]
    %v118 = vld [vmem:[%s1 + $0x1a8] sm:$0xff]
    %v119 = vld [vmem:[%s1 + $0x1b0] sm:$0xff]
    %v120 = vld [vmem:[%s1 + $0x1b8] sm:$0xff]
    %v121 = vld [vmem:[%s1 + $0x1c0] sm:$0xff]
    %v122 = vld [vmem:[%s1 + $0x1c8] sm:$0xff]
    %v123 = vld [vmem:[%s1 + $0x1d0] sm:$0xff]
    %v124 = vld [vmem:[%s1 + $0x1d8] sm:$0xff]
    %v125 = vld [vmem:[%s1 + $0x1e0] sm:$0xff]
    %v126 = vld [vmem:[%s1 + $0x1e8] sm:$0xff]
    %v127 = vld [vmem:[%s1 + $0x1f0] sm:$0xff]
    %v128 = vld [vmem:[%s1 + $0x1f8] sm:$0xff]
    %v129 = vld [vmem:[%s1 + $0x200] sm:$0xff]
    %v130 = vld [vmem:[%s1 + $0x208] sm:$0xff]
    %v131 = vld [vmem:[%s1 + $0x210] sm:$0xff]
    %v132 = vld [vmem:[%s1 + $0x218] sm:$0xff]
    %v133 = vld [vmem:[%s1 + $0x220] sm:$0xff]
    %v134 = vld [vmem:[%s1 + $0x228] sm:$0xff]
    %v135 = vld [vmem:[%s1 + $0x230] sm:$0xff]
    %v136 = vld [vmem:[%s1 + $0x238] sm:$0xff]
    %v137 = vld [vmem:[%s1 + $0x240] sm:$0xff]
    %v138 = vld [vmem:[%s1 + $0x248] sm:$0xff]
    %v139 = vld [vmem:[%s1 + $0x250] sm:$0xff]
    %v140 = vld [vmem:[%s1 + $0x258] sm:$0xff]
    %v141 = vld [vmem:[%s1 + $0x260] sm:$0xff]
    %v142 = vld [vmem:[%s1 + $0x268] sm:$0xff]
    %v143 = vld [vmem:[%s1 + $0x270] sm:$0xff]
    %v144 = vld [vmem:[%s1 + $0x278] sm:$0xff]
    %v145 = vld [vmem:[%s1 + $0x280] sm:$0xff]
    %v146 = vld [vmem:[%s1 + $0x288] sm:$0xff]
    %v147 = vld [vmem:[%s1 + $0x290] sm:$0xff]
    %v148 = vld [vmem:[%s1 + $0x298] sm:$0xff]
    %v149 = vld [vmem:[%s1 + $0x2a0] sm:$0xff]
    %v150 = vld [vmem:[%s1 + $0x2a8] sm:$0xff]
    %v151 = vld [vmem:[%s1 + $0x2b0] sm:$0xff]
    %v152 = vld [vmem:[%s1 + $0x2b8] sm:$0xff]
    %v153 = vld [vmem:[%s1 + $0x2c0] sm:$0xff]
    %v154 = vld [vmem:[%s1 + $0x2c8] sm:$0xff]
    %v155 = vld [vmem:[%s1 + $0x2d0] sm:$0xff]
    %v156 = vld [vmem:[%s1 + $0x2d8] sm:$0xff]
    %v157 = vld [vmem:[%s1 + $0x2e0] sm:$0xff]
    %v158 = vld [vmem:[%s1 + $0x2e8] sm:$0xff]
    %v159 = vld [vmem:[%s1 + $0x2f0] sm:$0xff]
    %v160 = vld [vmem:[%s1 + $0x2f8] sm:$0xff]
    %v161 = vld [vmem:[%s1 + $0x300] sm:$0xff]
    %v162 = vld [vmem:[%s1 + $0x308] sm:$0xff]
    %v163 = vld [vmem:[%s1 + $0x310] sm:$0xff]
    %v164 = vld [vmem:[%s1 + $0x318] sm:$0xff]
    %v165 = vld [vmem:[%s1 + $0x320] sm:$0xff]
    %v166 = vld [vmem:[%s1 + $0x328] sm:$0xff]
    %v167 = vld [vmem:[%s1 + $0x330] sm:$0xff]
    %v168 = vld [vmem:[%s1 + $0x338] sm:$0xff]
    %v169 = vld [vmem:[%s1 + $0x340] sm:$0xff]
    %v170 = vld [vmem:[%s1 + $0x348] sm:$0xff]
    %v171 = vld [vmem:[%s1 + $0x350] sm:$0xff]
    %v172 = vld [vmem:[%s1 + $0x358] sm:$0xff]
    %v173 = vld [vmem:[%s1 + $0x360] sm:$0xff]
    %v174 = vld [vmem:[%s1 + $0x368] sm:$0xff]
    %v175 = vld [vmem:[%s1 + $0x370] sm:$0xff]
    %v176 = vld [vmem:[%s1 + $0x378] sm:$0xff]
    %v177 = vld [vmem:[%s1 + $0x380] sm:$0xff]
    %v178 = vld [vmem:[%s1 + $0x388] sm:$0xff]
    %v179 = vld [vmem:[%s1 + $0x390] sm:$0xff]
    %v180 = vld [vmem:[%s1 + $0x398] sm:$0xff]
    %v181 = vld [vmem:[%s1 + $0x3a0] sm:$0xff]
    %v182 = vld [vmem:[%s1 + $0x3a8] sm:$0xff]
    %v183 = vld [vmem:[%s1 + $0x3b0] sm:$0xff]
    %v184 = vld [vmem:[%s1 + $0x3b8] sm:$0xff]
    %v185 = vld [vmem:[%s1 + $0x3c0] sm:$0xff]
    %v186 = vld [vmem:[%s1 + $0x3c8] sm:$0xff]
    %v187 = vld [vmem:[%s1 + $0x3d0] sm:$0xff]
    %v188 = vld [vmem:[%s1 + $0x3d8] sm:$0xff]
    %v189 = vld [vmem:[%s1 + $0x3e0] sm:$0xff]
    %v190 = vld [vmem:[%s1 + $0x3e8] sm:$0xff]
    %v191 = vld [vmem:[%s1 + $0x3f0] sm:$0xff]
    %v192 = vld [vmem:[%s1 + $0x3f8] sm:$0xff]
    %v193 = vld [vmem:[%s2] sm:$0x1]
    %v195 = vperm.slane %v193, 0
    %199 = vst [vmem:[#allocation1] ss:$4 sm:$0xff] %v63
    %s200 = scalar_lea.vmem [#allocation1], 32
    %201 = vst [vmem:[%s200] ss:$4 sm:$0xff] %v64
    %v202 = vld.sshfl [vmem:[#allocation1] sm:$0xff pattern:$0x73625140]
    %v203 = vld.sshfl [vmem:[#allocation1 + $0x8] sm:$0xff pattern:$0x73625140]
    %v204 = vld.sshfl [vmem:[#allocation1 + $0x10] sm:$0xff pattern:$0x73625140]
    %v205 = vld.sshfl [vmem:[#allocation1 + $0x18] sm:$0xff pattern:$0x73625140]
    %v206 = vld.sshfl [vmem:[#allocation1 + $0x20] sm:$0xff pattern:$0x73625140]
    %v207 = vld.sshfl [vmem:[#allocation1 + $0x28] sm:$0xff pattern:$0x73625140]
    %v208 = vld.sshfl [vmem:[#allocation1 + $0x30] sm:$0xff pattern:$0x73625140]
    %v209 = vld.sshfl [vmem:[#allocation1 + $0x38] sm:$0xff pattern:$0x73625140]
    %218 = vmatpush.msra.mxu0 %v80
    %219 = vmatpush.msra.mxu0 %v79
    %220 = vmatpush.msra.mxu0 %v78
    %221 = vmatpush.msra.mxu0 %v77
    %222 = vmatpush.msra.mxu0 %v76
    %223 = vmatpush.msra.mxu0 %v75
    %224 = vmatpush.msra.mxu0 %v74
    %225 = vmatpush.msra.mxu0 %v73
    %226 = vmatpush.msra.mxu0 %v72
    %227 = vmatpush.msra.mxu0 %v71
    %228 = vmatpush.msra.mxu0 %v70
    %229 = vmatpush.msra.mxu0 %v69
    %230 = vmatpush.msra.mxu0 %v68
    %231 = vmatpush.msra.mxu0 %v67
    %232 = vmatpush.msra.mxu0 %v66
    %233 = vmatpush.msra.mxu0 %v65
    %234 = vmatmul.f32.gmra.mxu0 %v202
    %v235 = vpop.f32.mrf.mxu0
    %v236 = vadd.f32 %v195, %v235
    %237 = vdwg.mxu0
    %238 = vmatpush.msra.mxu0 %v96
    %239 = vmatpush.msra.mxu0 %v95
    %240 = vmatpush.msra.mxu0 %v94
    %241 = vmatpush.msra.mxu0 %v93
    %242 = vmatpush.msra.mxu0 %v92
    %243 = vmatpush.msra.mxu0 %v91
    %244 = vmatpush.msra.mxu0 %v90
    %245 = vmatpush.msra.mxu0 %v89
    %246 = vmatpush.msra.mxu0 %v88
    %247 = vmatpush.msra.mxu0 %v87
    %248 = vmatpush.msra.mxu0 %v86
    %249 = vmatpush.msra.mxu0 %v85
    %250 = vmatpush.msra.mxu0 %v84
    %251 = vmatpush.msra.mxu0 %v83
    %252 = vmatpush.msra.mxu0 %v82
    %253 = vmatpush.msra.mxu0 %v81
    %254 = vmatmul.f32.gmra.mxu0 %v203
    %v255 = vpop.f32.mrf.mxu0
    %v256 = vadd.f32 %v236, %v255
    %257 = vdwg.mxu0
    %258 = vmatpush.msra.mxu0 %v112
    %259 = vmatpush.msra.mxu0 %v111
    %260 = vmatpush.msra.mxu0 %v110
    %261 = vmatpush.msra.mxu0 %v109
    %262 = vmatpush.msra.mxu0 %v108
    %263 = vmatpush.msra.mxu0 %v107
    %264 = vmatpush.msra.mxu0 %v106
    %265 = vmatpush.msra.mxu0 %v105
    %266 = vmatpush.msra.mxu0 %v104
    %267 = vmatpush.msra.mxu0 %v103
    %268 = vmatpush.msra.mxu0 %v102
    %269 = vmatpush.msra.mxu0 %v101
    %270 = vmatpush.msra.mxu0 %v100
    %271 = vmatpush.msra.mxu0 %v99
    %272 = vmatpush.msra.mxu0 %v98
    %273 = vmatpush.msra.mxu0 %v97
    %274 = vmatmul.f32.gmra.mxu0 %v204
    %v275 = vpop.f32.mrf.mxu0
    %v276 = vadd.f32 %v256, %v275
    %277 = vdwg.mxu0
    %278 = vmatpush.msra.mxu0 %v128
    %279 = vmatpush.msra.mxu0 %v127
    %280 = vmatpush.msra.mxu0 %v126
    %281 = vmatpush.msra.mxu0 %v125
    %282 = vmatpush.msra.mxu0 %v124
    %283 = vmatpush.msra.mxu0 %v123
    %284 = vmatpush.msra.mxu0 %v122
    %285 = vmatpush.msra.mxu0 %v121
    %286 = vmatpush.msra.mxu0 %v120
    %287 = vmatpush.msra.mxu0 %v119
    %288 = vmatpush.msra.mxu0 %v118
    %289 = vmatpush.msra.mxu0 %v117
    %290 = vmatpush.msra.mxu0 %v116
    %291 = vmatpush.msra.mxu0 %v115
    %292 = vmatpush.msra.mxu0 %v114
    %293 = vmatpush.msra.mxu0 %v113
    %294 = vmatmul.f32.gmra.mxu0 %v205
    %v295 = vpop.f32.mrf.mxu0
    %v296 = vadd.f32 %v276, %v295
    %297 = vdwg.mxu0
    %298 = vmatpush.msra.mxu0 %v144
    %299 = vmatpush.msra.mxu0 %v143
    %300 = vmatpush.msra.mxu0 %v142
    %301 = vmatpush.msra.mxu0 %v141
    %302 = vmatpush.msra.mxu0 %v140
    %303 = vmatpush.msra.mxu0 %v139
    %304 = vmatpush.msra.mxu0 %v138
    %305 = vmatpush.msra.mxu0 %v137
    %306 = vmatpush.msra.mxu0 %v136
    %307 = vmatpush.msra.mxu0 %v135
    %308 = vmatpush.msra.mxu0 %v134
    %309 = vmatpush.msra.mxu0 %v133
    %310 = vmatpush.msra.mxu0 %v132
    %311 = vmatpush.msra.mxu0 %v131
    %312 = vmatpush.msra.mxu0 %v130
    %313 = vmatpush.msra.mxu0 %v129
    %314 = vmatmul.f32.gmra.mxu0 %v206
    %v315 = vpop.f32.mrf.mxu0
    %v316 = vadd.f32 %v296, %v315
    %317 = vdwg.mxu0
    %318 = vmatpush.msra.mxu0 %v160
    %319 = vmatpush.msra.mxu0 %v159
    %320 = vmatpush.msra.mxu0 %v158
    %321 = vmatpush.msra.mxu0 %v157
    %322 = vmatpush.msra.mxu0 %v156
    %323 = vmatpush.msra.mxu0 %v155
    %324 = vmatpush.msra.mxu0 %v154
    %325 = vmatpush.msra.mxu0 %v153
    %326 = vmatpush.msra.mxu0 %v152
    %327 = vmatpush.msra.mxu0 %v151
    %328 = vmatpush.msra.mxu0 %v150
    %329 = vmatpush.msra.mxu0 %v149
    %330 = vmatpush.msra.mxu0 %v148
    %331 = vmatpush.msra.mxu0 %v147
    %332 = vmatpush.msra.mxu0 %v146
    %333 = vmatpush.msra.mxu0 %v145
    %334 = vmatmul.f32.gmra.mxu0 %v207
    %v335 = vpop.f32.mrf.mxu0
    %v336 = vadd.f32 %v316, %v335
    %337 = vdwg.mxu0
    %338 = vmatpush.msra.mxu0 %v176
    %339 = vmatpush.msra.mxu0 %v175
    %340 = vmatpush.msra.mxu0 %v174
    %341 = vmatpush.msra.mxu0 %v173
    %342 = vmatpush.msra.mxu0 %v172
    %343 = vmatpush.msra.mxu0 %v171
    %344 = vmatpush.msra.mxu0 %v170
    %345 = vmatpush.msra.mxu0 %v169
    %346 = vmatpush.msra.mxu0 %v168
    %347 = vmatpush.msra.mxu0 %v167
    %348 = vmatpush.msra.mxu0 %v166
    %349 = vmatpush.msra.mxu0 %v165
    %350 = vmatpush.msra.mxu0 %v164
    %351 = vmatpush.msra.mxu0 %v163
    %352 = vmatpush.msra.mxu0 %v162
    %353 = vmatpush.msra.mxu0 %v161
    %354 = vmatmul.f32.gmra.mxu0 %v208
    %v355 = vpop.f32.mrf.mxu0
    %v356 = vadd.f32 %v336, %v355
    %357 = vdwg.mxu0
    %358 = vmatpush.msra.mxu0 %v192
    %359 = vmatpush.msra.mxu0 %v191
    %360 = vmatpush.msra.mxu0 %v190
    %361 = vmatpush.msra.mxu0 %v189
    %362 = vmatpush.msra.mxu0 %v188
    %363 = vmatpush.msra.mxu0 %v187
    %364 = vmatpush.msra.mxu0 %v186
    %365 = vmatpush.msra.mxu0 %v185
    %366 = vmatpush.msra.mxu0 %v184
    %367 = vmatpush.msra.mxu0 %v183
    %368 = vmatpush.msra.mxu0 %v182
    %369 = vmatpush.msra.mxu0 %v181
    %370 = vmatpush.msra.mxu0 %v180
    %371 = vmatpush.msra.mxu0 %v179
    %372 = vmatpush.msra.mxu0 %v178
    %373 = vmatpush.msra.mxu0 %v177
    %374 = vmatmul.f32.gmra.mxu0 %v209
    %v375 = vpop.f32.mrf.mxu0
    %v376 = vadd.f32 %v356, %v375
    %377 = vdwg.mxu0
    %v378 = vtanh.pop %v376
    %v379 = vld [vmem:[%s3] sm:$0xff]
    %v380 = vld [vmem:[%s3 + $0x8] sm:$0xff]
    %v381 = vld [vmem:[%s3 + $0x10] sm:$0xff]
    %v382 = vld [vmem:[%s3 + $0x18] sm:$0xff]
    %v383 = vld [vmem:[%s3 + $0x20] sm:$0xff]
    %v384 = vld [vmem:[%s3 + $0x28] sm:$0xff]
    %v385 = vld [vmem:[%s3 + $0x30] sm:$0xff]
    %v386 = vld [vmem:[%s3 + $0x38] sm:$0xff]
    %v387 = vld [vmem:[%s4] sm:$0x1]
    %v389 = vperm.slane %v387, 0
    %vm391 = vcmask 523264
    %v393 = vsel %vm391, %v378, 0
    %395 = vmatpush.msra.mxu0 0.0
    %396 = vmatpush.msra.mxu0 0.0
    %397 = vmatpush.msra.mxu0 0.0
    %398 = vmatpush.msra.mxu0 0.0
    %399 = vmatpush.msra.mxu0 0.0
    %400 = vmatpush.msra.mxu0 0.0
    %401 = vmatpush.msra.mxu0 0.0
    %402 = vmatpush.msra.mxu0 0.0
    %403 = vmatpush.msra.mxu0 %v386
    %404 = vmatpush.msra.mxu0 %v385
    %405 = vmatpush.msra.mxu0 %v384
    %406 = vmatpush.msra.mxu0 %v383
    %407 = vmatpush.msra.mxu0 %v382
    %408 = vmatpush.msra.mxu0 %v381
    %409 = vmatpush.msra.mxu0 %v380
    %410 = vmatpush.msra.mxu0 %v379
    %411 = vmatmul.f32.gmra.mxu0 %v393
    %v412 = vpop.f32.mrf.mxu0
    %v413 = vadd.f32 %v389, %v412
    %414 = vdwg.mxu0
    %v415 = vtanh.pop %v413
    %v416 = vld [vmem:[%s5] sm:$0xff]
    %v417 = vld [vmem:[%s5 + $0x8] sm:$0xff]
    %v418 = vld [vmem:[%s6] sm:$0x1]
    %v420 = vperm.slane %v418, 0
    %vm422 = vcmask 130048
    %v424 = vsel %vm422, %v415, 0
    %426 = vmatpush.msra.mxu0 0.0
    %427 = vmatpush.msra.mxu0 0.0
    %428 = vmatpush.msra.mxu0 0.0
    %429 = vmatpush.msra.mxu0 0.0
    %430 = vmatpush.msra.mxu0 0.0
    %431 = vmatpush.msra.mxu0 0.0
    %432 = vmatpush.msra.mxu0 0.0
    %433 = vmatpush.msra.mxu0 0.0
    %434 = vmatpush.msra.mxu0 0.0
    %435 = vmatpush.msra.mxu0 0.0
    %436 = vmatpush.msra.mxu0 0.0
    %437 = vmatpush.msra.mxu0 0.0
    %438 = vmatpush.msra.mxu0 0.0
    %439 = vmatpush.msra.mxu0 0.0
    %440 = vmatpush.msra.mxu0 %v417
    %441 = vmatpush.msra.mxu0 %v416
    %442 = vmatmul.f32.gmra.mxu0 %v424
    %v443 = vpop.f32.mrf.mxu0
    %v444 = vadd.f32 %v420, %v443
    %445 = vdwg.mxu0
    %vm446 = vcmask 25600
    %v447 = vsel %vm446, %v444, -inf
    %448 = vmax.xlane.f32.xlu0 %v447
    %v449 = vpop.xlane.xlu0 %448
    %v450 = vsub.f32 %v444, %v449
    %v451 = vmul.f32 %v450, 1.442695
    %v452 = vpow.pop %v451
    %v453 = vsel %vm446, %v452, 0.0
    %454 = vadd.xlane.f32.xlu0 %v453
    %v455 = vpop.xlane.xlu0 %454
    %v456 = vrcp.pop %v455
    %v457 = vmul.f32 %v455, %v456
    %v458 = vsub.f32 1.0, %v457
    %v459 = vmul.f32 %v456, %v458
    %v460 = vadd.f32 %v456, %v459
    %vm461 = vweird.f32 %v455
    %vm462 = vweird.f32 %v456
    %vm463 = vmor %vm461, %vm462
    %v464 = vsel %vm463, %v456, %v460
    %v465 = vand.u32 2147483647, %v455
    %vm466 = vcmp.eq.f32.partialorder %v465, 8.507059e+37
    %v467 = vand.u32 %v455, 2147483648
    %v468 = vor.u32 1.1754944e-38, %v467
    %v469 = vsel %vm466, %v468, %v464
    %v470 = vmul.f32 %v452, %v469
    %v471 = vld [vmem:[#allocation2] sm:$0x1]
    %v472 = vsel %vm446, %v470, 0.0
    %v473 = vrot.slane %v472, 4
    %v474 = vadd.f32 %v472, %v473
    %v475 = vrot.slane %v474, 2
    %v476 = vadd.f32 %v474, %v475
    %v477 = vrot.slane %v476, 1
    %v478 = vadd.f32 %v476, %v477
    %v479 = vadd.f32 %v471, %v478
    %vm480 = vcmask 24576
    %481 = vst.msk [vmem:[#allocation2] sm:$0x1] %vm480, %v479
    // Predicated region
    $region34: #{tpu_custom_call.1} parent=1 // pred_check
      %p482 = pneg %p57
    $region35: #{tpu_custom_call.1} parent=1 // pred_check_branch
      %484 = sbr.rel (%p482) target = $region37
    $region36: #{tpu_custom_call.1} parent=1 // pred_region
      %v485 = vld [vmem:[#allocation2] sm:$0x1]
      %486 = vst.msk [vmem:[#allocation3] sm:$0x1] %vm480, %v485
    $region37: #{tpu_custom_call.1} parent=1 // pred_fallthru
      _
    // Predicated region
    $region38: #{tpu_custom_call.1} parent=1 // pred_check
      _
    $region39: #{tpu_custom_call.1} parent=1 // pred_check_branch
      %488 = sbr.rel (0) target = $region41
    $region40: #{tpu_custom_call.1} parent=1 // pred_region
      %490 = vsyncadd [#allocation4], 0
      %s492 = sshll.u32 [#allocation3], 4
      %s493 = int_to_ptr.vmem [resolvable:$true] %s492
      %s494 = sshll.u32 %s7, 4
      %s495 = int_to_ptr.hbm [resolvable:$true] %s494
      %497 = dma.vmem_to_hbm [thread:$0]  %s493, 16, %s495, [#allocation4]
    $region41: #{tpu_custom_call.1} parent=1 // pred_fallthru
      _
    // Predicated region
    $region42: #{tpu_custom_call.1} parent=1 // pred_check
      _
    $region43: #{tpu_custom_call.1} parent=1 // pred_check_branch
      %499 = sbr.rel (0) target = $region45
    $region44: #{tpu_custom_call.1} parent=1 // pred_region
      %501 = dma.done [#allocation4], 16
    $region45: #{tpu_custom_call.1} parent=1 // pred_fallthru
      _
    %502 = vsyncpa [#allocation4], 1

</llo_original>
